<compile_context>
chip_gen: v5e
topology: v5e:2x2
jax: 0.10.0
libtpu: 0.0.40
codegen_flags: <defaults>
</compile_context>

<pallas_src>
import functools

import jax
import jax.numpy as jnp
from jax import lax
from jax.experimental import pallas as pl
from jax.experimental.pallas import tpu as pltpu

HIDDEN = 100
IN_F = 2
OUT_F = 4

TB_MAX = 32768   # max batch lanes per grid step (x+out ~= 0.75 MiB per step)


def mlp_kernel(x_ref, w1_ref, b1_ref, w2_ref, b2_ref, o_ref, *, chunk):
    # x_ref: [nct, 2, chunk]  (each leading index = `chunk` batch elements on lanes)
    # w1:    [100, 2]    b1: [100, 1]
    # w2:    [4, 100]    b2: [4, 1]
    # o_ref: [nct, 4, chunk]
    nct = x_ref.shape[0]

    # Hoisted once per grid step (amortized over the nct inner chunks):
    # lane-broadcast the tiny weight columns / biases into chunk-wide panels so
    # the inner loop is pure full-vreg mul/add/max plus one small MXU dot.
    w1c0 = jnp.broadcast_to(w1_ref[:, 0:1], (HIDDEN, chunk))   # [100, chunk]
    w1c1 = jnp.broadcast_to(w1_ref[:, 1:2], (HIDDEN, chunk))
    b1p = jnp.broadcast_to(b1_ref[...], (HIDDEN, chunk))
    b2p = jnp.broadcast_to(b2_ref[...], (OUT_F, chunk))        # [4, chunk]
    w2 = w2_ref[...]                                           # [4, 100]

    def body(c, carry):
        xc = x_ref[c]                          # [2, chunk]   batch on lanes
        x0 = xc[0:1, :]
        x1 = xc[1:2, :]
        # Layer 1 on the VPU: K=2 is far too shallow to be worth an MXU pass.
        h = jnp.maximum(w1c0 * x0 + w1c1 * x1 + b1p, 0.0)      # [100, chunk]
        # Layer 2 on the MXU (K=100), f32 accumulation.
        # (For strict f32 parity one can add precision=jax.lax.Precision.HIGHEST;
        #  default precision matches the pure-JAX reference within 1e-5 here.)
        out = jnp.dot(w2, h, preferred_element_type=jnp.float32) + b2p
        o_ref[c] = out.astype(o_ref.dtype)
        return carry

    lax.fori_loop(0, nct, body, 0)


def _round_up(n, m):
    return ((n + m - 1) // m) * m


def _choose_batch_tile(B, tb_max=TB_MAX):
    """Batch tile: a multiple of 128 lanes, large enough to amortize the fixed
    per-grid-step cost, sized to minimize padding, and (when B > 128) giving at
    least 2 grid steps so the 'parallel' axis can split across v7x's 2 TCs."""
    b128 = _round_up(B, 128)
    if b128 <= 128:
        return 128
    n_steps = max(2, -(-b128 // tb_max))          # ceil(b128 / tb_max), >= 2
    return _round_up(-(-b128 // n_steps), 128)    # ceil(b128 / n_steps) -> x128


def nn_forward(x, w1, b1, w2, b2, *, tb=None):
    """x: [B, 2] f32; w1: [100, 2]; b1: [100]; w2: [4, 100]; b2: [4].
    Returns [B, 4] f32 (same semantics as the PyTorch module)."""
    B = x.shape[0]
    if tb is None:
        tb = _choose_batch_tile(B)
    else:
        # Guard: the lane-tile must be a (positive) multiple of 128.
        tb = max(128, _round_up(int(tb), 128))
        tb = min(tb, _round_up(B, 128))

    chunk = 256 if tb % 256 == 0 else 128   # inner lane-chunk (h = 13-26 vregs)
    nct = tb // chunk                       # chunks per grid step
    Bp = _round_up(B, tb)
    Nc = Bp // chunk                        # total chunks
    grid = (Bp // tb,)

    # Wrapper-side layout plumbing (one fused XLA copy each way): batch goes on
    # the 128-lane axis, pre-split into chunk-wide lane groups indexed by the
    # leading dim so the kernel only ever indexes the leading dimension.
    xp = jnp.zeros((Bp, IN_F), x.dtype).at[:B, :].set(x)
    x_chunks = xp.reshape(Nc, chunk, IN_F).transpose(0, 2, 1)   # [Nc, 2, chunk]
    b1c = b1.reshape(HIDDEN, 1)
    b2c = b2.reshape(OUT_F, 1)

    kernel = functools.partial(mlp_kernel, chunk=chunk)
    out_chunks = pl.pallas_call(
        kernel,
        out_shape=jax.ShapeDtypeStruct((Nc, OUT_F, chunk), jnp.float32),
        grid_spec=pl.GridSpec(
            grid=grid,
            in_specs=[
                pl.BlockSpec((nct, IN_F, chunk), lambda i: (i, 0, 0)),  # x tile
                pl.BlockSpec((HIDDEN, IN_F), lambda i: (0, 0)),         # w1 (resident)
                pl.BlockSpec((HIDDEN, 1), lambda i: (0, 0)),            # b1 (resident)
                pl.BlockSpec((OUT_F, HIDDEN), lambda i: (0, 0)),        # w2 (resident)
                pl.BlockSpec((OUT_F, 1), lambda i: (0, 0)),             # b2 (resident)
            ],
            out_specs=pl.BlockSpec((nct, OUT_F, chunk), lambda i: (i, 0, 0)),
        ),
        compiler_params=pltpu.CompilerParams(
            # Megacore shard of the batch axis on v7x; no-op on v5e/v6e.
            dimension_semantics=("parallel",),
        ),
    )(x_chunks, w1, b1c, w2, b2c)

    # [Nc, 4, chunk] -> [Bp, 4] -> [B, 4]
    return out_chunks.transpose(0, 2, 1).reshape(Bp, OUT_F)[:B, :]


def init_params(key):
    """Deterministic init mirroring PyTorch's default Linear init:
    U(-1/sqrt(fan_in), 1/sqrt(fan_in)). Weights kept in PyTorch [out, in] layout."""
    k1, k2, k3, k4 = jax.random.split(key, 4)
    bound1 = 1.0 / jnp.sqrt(float(IN_F))      # linear1: fan_in = 2
    bound2 = 1.0 / jnp.sqrt(float(HIDDEN))    # linear3: fan_in = 100
    w1 = jax.random.uniform(k1, (HIDDEN, IN_F), jnp.float32, -bound1, bound1)
    b1 = jax.random.uniform(k2, (HIDDEN,), jnp.float32, -bound1, bound1)
    w2 = jax.random.uniform(k3, (OUT_F, HIDDEN), jnp.float32, -bound2, bound2)
    b2 = jax.random.uniform(k4, (OUT_F,), jnp.float32, -bound2, bound2)
    return w1, b1, w2, b2


def nn_reference(x, w1, b1, w2, b2):
    h = jnp.maximum(x @ w1.T + b1, 0.0)
    return h @ w2.T + b2


if __name__ == "__main__":
    key = jax.random.PRNGKey(0)
    kx, kp = jax.random.split(key)

    B = 8
    x = jax.random.normal(kx, (B, IN_F), jnp.float32)   # module takes 2-feature inputs
    w1, b1, w2, b2 = init_params(kp)

    out = jax.block_until_ready(nn_forward(x, w1, b1, w2, b2))
    ref = nn_reference(x, w1, b1, w2, b2)
    assert out.shape == (B, OUT_F)
    assert jnp.allclose(out, ref, atol=1e-5, rtol=1e-5)

    # Batch that is not a multiple of the tile size (padding + grid of 2).
    B2 = 300
    x2 = jax.random.normal(jax.random.PRNGKey(1), (B2, IN_F), jnp.float32)
    out2 = jax.block_until_ready(nn_forward(x2, w1, b1, w2, b2))
    assert jnp.allclose(out2, nn_reference(x2, w1, b1, w2, b2), atol=1e-5, rtol=1e-5)

    # Batch large enough to exercise the multi-chunk inner loop (nct > 1).
    B3 = 1024
    x3 = jax.random.normal(jax.random.PRNGKey(2), (B3, IN_F), jnp.float32)
    out3 = jax.block_until_ready(nn_forward(x3, w1, b1, w2, b2))
    assert jnp.allclose(out3, nn_reference(x3, w1, b1, w2, b2), atol=1e-5, rtol=1e-5)

    print("KERNEL_OK")
</pallas_src>

<mosaic_0001>
module attributes {stable_mosaic.version = 11 : i64} {
  func.func @mlp_kernel(%arg0: i32, %arg1: memref<1x2x128xf32, #tpu.memory_space<vmem>>, %arg2: memref<100x2xf32, #tpu.memory_space<vmem>>, %arg3: memref<100x1xf32, #tpu.memory_space<vmem>>, %arg4: memref<4x100xf32, #tpu.memory_space<vmem>>, %arg5: memref<4x1xf32, #tpu.memory_space<vmem>>, %arg6: memref<1x4x128xf32, #tpu.memory_space<vmem>>) attributes {dimension_semantics = [#tpu.dimension_semantics<parallel>], iteration_bounds = array<i64: 1>, scalar_prefetch = 0 : i64, scratch_operands = 0 : i64, tpu.core_type = #tpu.core_type<tc>, window_params = [{transform_indices = @transform_0, window_bounds = array<i64: 1, 2, 128>}, {pipeline_mode = #tpu.pipeline_mode<synchronous>, transform_indices = @transform_1, window_bounds = array<i64: 100, 2>}, {pipeline_mode = #tpu.pipeline_mode<synchronous>, transform_indices = @transform_2, window_bounds = array<i64: 100, 1>}, {pipeline_mode = #tpu.pipeline_mode<synchronous>, transform_indices = @transform_3, window_bounds = array<i64: 4, 100>}, {pipeline_mode = #tpu.pipeline_mode<synchronous>, transform_indices = @transform_4, window_bounds = array<i64: 4, 1>}, {transform_indices = @transform_5, window_bounds = array<i64: 1, 4, 128>}]} {
    %c0 = arith.constant 0 : index
    %c0_0 = arith.constant 0 : index
    %0 = vector.load %arg2[%c0, %c0_0] : memref<100x2xf32, #tpu.memory_space<vmem>>, vector<100x1xf32>
    %1 = vector.shape_cast %0 : vector<100x1xf32> to vector<100x1xf32>
    %2 = vector.broadcast %1 : vector<100x1xf32> to vector<100x128xf32>
    %c0_1 = arith.constant 0 : index
    %c1 = arith.constant 1 : index
    %3 = vector.load %arg2[%c0_1, %c1] : memref<100x2xf32, #tpu.memory_space<vmem>>, vector<100x1xf32>
    %4 = vector.shape_cast %3 : vector<100x1xf32> to vector<100x1xf32>
    %5 = vector.broadcast %4 : vector<100x1xf32> to vector<100x128xf32>
    %c0_2 = arith.constant 0 : index
    %c0_3 = arith.constant 0 : index
    %6 = vector.load %arg3[%c0_2, %c0_3] : memref<100x1xf32, #tpu.memory_space<vmem>>, vector<100x1xf32>
    %7 = vector.shape_cast %6 : vector<100x1xf32> to vector<100x1xf32>
    %8 = vector.broadcast %7 : vector<100x1xf32> to vector<100x128xf32>
    %c0_4 = arith.constant 0 : index
    %c0_5 = arith.constant 0 : index
    %9 = vector.load %arg5[%c0_4, %c0_5] : memref<4x1xf32, #tpu.memory_space<vmem>>, vector<4x1xf32>
    %10 = vector.shape_cast %9 : vector<4x1xf32> to vector<4x1xf32>
    %11 = vector.broadcast %10 : vector<4x1xf32> to vector<4x128xf32>
    %c0_6 = arith.constant 0 : index
    %c0_7 = arith.constant 0 : index
    %12 = vector.load %arg4[%c0_6, %c0_7] : memref<4x100xf32, #tpu.memory_space<vmem>>, vector<4x100xf32>
    %c0_i32 = arith.constant 0 : i32
    %13 = arith.index_cast %c0_i32 : i32 to index
    %c0_8 = arith.constant 0 : index
    %c0_9 = arith.constant 0 : index
    %14 = vector.load %arg1[%13, %c0_8, %c0_9] : memref<1x2x128xf32, #tpu.memory_space<vmem>>, vector<1x2x128xf32>
    %15 = vector.shape_cast %14 : vector<1x2x128xf32> to vector<2x128xf32>
    %16 = vector.extract_strided_slice %15 {offsets = [0, 0], sizes = [1, 128], strides = [1, 1]} : vector<2x128xf32> to vector<1x128xf32>
    %17 = vector.extract_strided_slice %15 {offsets = [1, 0], sizes = [1, 128], strides = [1, 1]} : vector<2x128xf32> to vector<1x128xf32>
    %18 = vector.broadcast %16 : vector<1x128xf32> to vector<100x128xf32>
    %19 = arith.mulf %2, %18 : vector<100x128xf32>
    %20 = vector.broadcast %17 : vector<1x128xf32> to vector<100x128xf32>
    %21 = arith.mulf %5, %20 : vector<100x128xf32>
    %22 = arith.addf %19, %21 : vector<100x128xf32>
    %23 = arith.addf %22, %8 : vector<100x128xf32>
    %cst = arith.constant 0.000000e+00 : f32
    %24 = vector.broadcast %cst : f32 to vector<100x128xf32>
    %25 = arith.maximumf %23, %24 : vector<100x128xf32>
    %cst_10 = arith.constant dense<0.000000e+00> : vector<4x128xf32>
    %26 = tpu.matmul %12, %25, %cst_10 {dimension_numbers = #tpu.dot_dimension_numbers<[1], [0], [0], [1], [0, 0, 1, 1], [], []>} : vector<4x100xf32>, vector<100x128xf32>, vector<4x128xf32> -> vector<4x128xf32>
    %27 = arith.addf %26, %11 : vector<4x128xf32>
    %28 = arith.index_cast %c0_i32 : i32 to index
    %c0_11 = arith.constant 0 : index
    %c0_12 = arith.constant 0 : index
    %29 = vector.load %arg6[%28, %c0_11, %c0_12] : memref<1x4x128xf32, #tpu.memory_space<vmem>>, vector<1x4x128xf32>
    %30 = vector.shape_cast %29 : vector<1x4x128xf32> to vector<4x128xf32>
    %31 = vector.shape_cast %27 : vector<4x128xf32> to vector<1x4x128xf32>
    tpu.vector_store %arg6[%28, %c0_11, %c0_12], %31 {strides = array<i32>} : memref<1x4x128xf32, #tpu.memory_space<vmem>>, vector<1x4x128xf32>,
    %c1_i32 = arith.constant 1 : i32
    return
  }
  func.func @transform_0(%arg0: i32) -> (i32, i32, i32) {
    %c0_i32 = arith.constant 0 : i32
    %c0_i32_0 = arith.constant 0 : i32
    %c0_i32_1 = arith.constant 0 : i32
    return %arg0, %c0_i32, %c0_i32_0 : i32, i32, i32
  }
  func.func @transform_1(%arg0: i32) -> (i32, i32) {
    %c0_i32 = arith.constant 0 : i32
    %c0_i32_0 = arith.constant 0 : i32
    %c0_i32_1 = arith.constant 0 : i32
    return %c0_i32, %c0_i32_0 : i32, i32
  }
  func.func @transform_2(%arg0: i32) -> (i32, i32) {
    %c0_i32 = arith.constant 0 : i32
    %c0_i32_0 = arith.constant 0 : i32
    %c0_i32_1 = arith.constant 0 : i32
    return %c0_i32, %c0_i32_0 : i32, i32
  }
  func.func @transform_3(%arg0: i32) -> (i32, i32) {
    %c0_i32 = arith.constant 0 : i32
    %c0_i32_0 = arith.constant 0 : i32
    %c0_i32_1 = arith.constant 0 : i32
    return %c0_i32, %c0_i32_0 : i32, i32
  }
  func.func @transform_4(%arg0: i32) -> (i32, i32) {
    %c0_i32 = arith.constant 0 : i32
    %c0_i32_0 = arith.constant 0 : i32
    %c0_i32_1 = arith.constant 0 : i32
    return %c0_i32, %c0_i32_0 : i32, i32
  }
  func.func @transform_5(%arg0: i32) -> (i32, i32, i32) {
    %c0_i32 = arith.constant 0 : i32
    %c0_i32_0 = arith.constant 0 : i32
    %c0_i32_1 = arith.constant 0 : i32
    return %arg0, %c0_i32, %c0_i32_0 : i32, i32, i32
  }
}

</mosaic_0001>

<llo_original>
// kernel: tpu_custom_call.1
$region0: #{tpu_custom_call.1}
  #allocation0 [shape = 'u32[]', space=smem, size = 0x4, offset = 0x4, fixed_abs, tag = 'smem constant byte address 0x4 - core index']
  #allocation1 [shape = 'u32[72,128]{1,0:T(1,128)}', space=vmem, size = 0x9000, scoped, tag = 'internal scratch']
  %s0 = inlined_call_operand.vmem [shape: f32[1,2,128], index: 0, kind: input, shape index: {}]
  %s1 = inlined_call_operand.vmem [shape: f32[100,2], index: 1, kind: input, shape index: {}]
  %s2 = inlined_call_operand.vmem [shape: f32[100,1], index: 2, kind: input, shape index: {}]
  %s3 = inlined_call_operand.vmem [shape: f32[4,100], index: 3, kind: input, shape index: {}]
  %s4 = inlined_call_operand.vmem [shape: f32[4,1], index: 4, kind: input, shape index: {}]
  %s5 = inlined_call_operand.hbm [shape: f32[1,4,128], index: 5, kind: output, shape index: {}]
  %s6 = sld [smem:[#allocation0]]
  $region30: #{tpu_custom_call.1} parent=0
    _
  %s8 = ssub.s32 1, %s6
  %s9 = scalar_select 0, %s8, %s6
  $region1: #{tpu_custom_call.1} parent=0
    #allocation2 [shape = 'u8[2048]{0}', space=vmem, size = 0x800, scoped, tag = 'output window, operand 0, single buffered']
    #allocation3 [shape = 's32[1]{0}', space=sflag, size = 0x4, scoped, tag = 'scoped memory for tpu_custom_call.1']
    %10 = vsyncpa [#allocation3], 0
    // Predicated region
    $region2: #{tpu_custom_call.1} parent=1 // pred_check
      _
    $region3: #{tpu_custom_call.1} parent=1 // pred_check_branch
      %12 = sbr.rel (0) target = $region5
    $region4: #{tpu_custom_call.1} parent=1 // pred_region
      _
    $region5: #{tpu_custom_call.1} parent=1 // pred_fallthru
      _
    // Predicated region
    $region6: #{tpu_custom_call.1} parent=1 // pred_check
      _
    $region7: #{tpu_custom_call.1} parent=1 // pred_check_branch
      %14 = sbr.rel (0) target = $region9
    $region8: #{tpu_custom_call.1} parent=1 // pred_region
      _
    $region9: #{tpu_custom_call.1} parent=1 // pred_fallthru
      _
    // Predicated region
    $region10: #{tpu_custom_call.1} parent=1 // pred_check
      _
    $region11: #{tpu_custom_call.1} parent=1 // pred_check_branch
      %16 = sbr.rel (0) target = $region13
    $region12: #{tpu_custom_call.1} parent=1 // pred_region
      _
    $region13: #{tpu_custom_call.1} parent=1 // pred_fallthru
      _
    // Predicated region
    $region14: #{tpu_custom_call.1} parent=1 // pred_check
      _
    $region15: #{tpu_custom_call.1} parent=1 // pred_check_branch
      %18 = sbr.rel (0) target = $region17
    $region16: #{tpu_custom_call.1} parent=1 // pred_region
      _
    $region17: #{tpu_custom_call.1} parent=1 // pred_fallthru
      _
    // Predicated region
    $region18: #{tpu_custom_call.1} parent=1 // pred_check
      _
    $region19: #{tpu_custom_call.1} parent=1 // pred_check_branch
      %20 = sbr.rel (0) target = $region21
    $region20: #{tpu_custom_call.1} parent=1 // pred_region
      _
    $region21: #{tpu_custom_call.1} parent=1 // pred_fallthru
      _
    %v21 = vld [vmem:[%s1] sm:$0xff]
    %v22 = vld [vmem:[%s1 + $0x8] sm:$0xff]
    %v23 = vld [vmem:[%s1 + $0x10] sm:$0xff]
    %v24 = vld [vmem:[%s1 + $0x18] sm:$0xff]
    %v25 = vld [vmem:[%s1 + $0x20] sm:$0xff]
    %v26 = vld [vmem:[%s1 + $0x28] sm:$0xff]
    %v27 = vld [vmem:[%s1 + $0x30] sm:$0xff]
    %v28 = vld [vmem:[%s1 + $0x38] sm:$0xff]
    %v29 = vld [vmem:[%s1 + $0x40] sm:$0xff]
    %v30 = vld [vmem:[%s1 + $0x48] sm:$0xff]
    %v31 = vld [vmem:[%s1 + $0x50] sm:$0xff]
    %v32 = vld [vmem:[%s1 + $0x58] sm:$0xff]
    %v33 = vld [vmem:[%s1 + $0x60] sm:$0xf]
    %35 = vset.pattern.permute.xlu0 0
    %36 = vperm.xlu0 %35, %v21
    %v37 = vpop.permute.xlu0 %36
    %40 = vset.pattern.permute.xlu0 0
    %41 = vperm.xlu0 %40, %v22
    %v42 = vpop.permute.xlu0 %41
    %45 = vset.pattern.permute.xlu0 0
    %46 = vperm.xlu0 %45, %v23
    %v47 = vpop.permute.xlu0 %46
    %50 = vset.pattern.permute.xlu0 0
    %51 = vperm.xlu0 %50, %v24
    %v52 = vpop.permute.xlu0 %51
    %55 = vset.pattern.permute.xlu0 0
    %56 = vperm.xlu0 %55, %v25
    %v57 = vpop.permute.xlu0 %56
    %60 = vset.pattern.permute.xlu0 0
    %61 = vperm.xlu0 %60, %v26
    %v62 = vpop.permute.xlu0 %61
    %65 = vset.pattern.permute.xlu0 0
    %66 = vperm.xlu0 %65, %v27
    %v67 = vpop.permute.xlu0 %66
    %70 = vset.pattern.permute.xlu0 0
    %71 = vperm.xlu0 %70, %v28
    %v72 = vpop.permute.xlu0 %71
    %75 = vset.pattern.permute.xlu0 0
    %76 = vperm.xlu0 %75, %v29
    %v77 = vpop.permute.xlu0 %76
    %80 = vset.pattern.permute.xlu0 0
    %81 = vperm.xlu0 %80, %v30
    %v82 = vpop.permute.xlu0 %81
    %85 = vset.pattern.permute.xlu0 0
    %86 = vperm.xlu0 %85, %v31
    %v87 = vpop.permute.xlu0 %86
    %90 = vset.pattern.permute.xlu0 0
    %91 = vperm.xlu0 %90, %v32
    %v92 = vpop.permute.xlu0 %91
    %95 = vset.pattern.permute.xlu0 0
    %96 = vperm.xlu0 %95, %v33
    %v97 = vpop.permute.xlu0 %96
    %99 = vset.pattern.permute.xlu0 1
    %100 = vperm.xlu0 %99, %v21
    %v101 = vpop.permute.xlu0 %100
    %103 = vset.pattern.permute.xlu0 1
    %104 = vperm.xlu0 %103, %v22
    %v105 = vpop.permute.xlu0 %104
    %107 = vset.pattern.permute.xlu0 1
    %108 = vperm.xlu0 %107, %v23
    %v109 = vpop.permute.xlu0 %108
    %111 = vset.pattern.permute.xlu0 1
    %112 = vperm.xlu0 %111, %v24
    %v113 = vpop.permute.xlu0 %112
    %115 = vset.pattern.permute.xlu0 1
    %116 = vperm.xlu0 %115, %v25
    %v117 = vpop.permute.xlu0 %116
    %119 = vset.pattern.permute.xlu0 1
    %120 = vperm.xlu0 %119, %v26
    %v121 = vpop.permute.xlu0 %120
    %123 = vset.pattern.permute.xlu0 1
    %124 = vperm.xlu0 %123, %v27
    %v125 = vpop.permute.xlu0 %124
    %127 = vset.pattern.permute.xlu0 1
    %128 = vperm.xlu0 %127, %v28
    %v129 = vpop.permute.xlu0 %128
    %131 = vset.pattern.permute.xlu0 1
    %132 = vperm.xlu0 %131, %v29
    %v133 = vpop.permute.xlu0 %132
    %135 = vset.pattern.permute.xlu0 1
    %136 = vperm.xlu0 %135, %v30
    %v137 = vpop.permute.xlu0 %136
    %139 = vset.pattern.permute.xlu0 1
    %140 = vperm.xlu0 %139, %v31
    %v141 = vpop.permute.xlu0 %140
    %143 = vset.pattern.permute.xlu0 1
    %144 = vperm.xlu0 %143, %v32
    %v145 = vpop.permute.xlu0 %144
    %147 = vset.pattern.permute.xlu0 1
    %148 = vperm.xlu0 %147, %v33
    %v149 = vpop.permute.xlu0 %148
    %v151 = vld [vmem:[%s2] sm:$0xff]
    %v152 = vld [vmem:[%s2 + $0x8] sm:$0xff]
    %v153 = vld [vmem:[%s2 + $0x10] sm:$0xff]
    %v154 = vld [vmem:[%s2 + $0x18] sm:$0xff]
    %v155 = vld [vmem:[%s2 + $0x20] sm:$0xff]
    %v156 = vld [vmem:[%s2 + $0x28] sm:$0xff]
    %v157 = vld [vmem:[%s2 + $0x30] sm:$0xff]
    %v158 = vld [vmem:[%s2 + $0x38] sm:$0xff]
    %v159 = vld [vmem:[%s2 + $0x40] sm:$0xff]
    %v160 = vld [vmem:[%s2 + $0x48] sm:$0xff]
    %v161 = vld [vmem:[%s2 + $0x50] sm:$0xff]
    %v162 = vld [vmem:[%s2 + $0x58] sm:$0xff]
    %v163 = vld [vmem:[%s2 + $0x60] sm:$0xf]
    %165 = vset.pattern.permute.xlu0 0
    %166 = vperm.xlu0 %165, %v151
    %v167 = vpop.permute.xlu0 %166
    %170 = vset.pattern.permute.xlu0 0
    %171 = vperm.xlu0 %170, %v152
    %v172 = vpop.permute.xlu0 %171
    %175 = vset.pattern.permute.xlu0 0
    %176 = vperm.xlu0 %175, %v153
    %v177 = vpop.permute.xlu0 %176
    %180 = vset.pattern.permute.xlu0 0
    %181 = vperm.xlu0 %180, %v154
    %v182 = vpop.permute.xlu0 %181
    %185 = vset.pattern.permute.xlu0 0
    %186 = vperm.xlu0 %185, %v155
    %v187 = vpop.permute.xlu0 %186
    %190 = vset.pattern.permute.xlu0 0
    %191 = vperm.xlu0 %190, %v156
    %v192 = vpop.permute.xlu0 %191
    %195 = vset.pattern.permute.xlu0 0
    %196 = vperm.xlu0 %195, %v157
    %v197 = vpop.permute.xlu0 %196
    %200 = vset.pattern.permute.xlu0 0
    %201 = vperm.xlu0 %200, %v158
    %v202 = vpop.permute.xlu0 %201
    %205 = vset.pattern.permute.xlu0 0
    %206 = vperm.xlu0 %205, %v159
    %v207 = vpop.permute.xlu0 %206
    %210 = vset.pattern.permute.xlu0 0
    %211 = vperm.xlu0 %210, %v160
    %v212 = vpop.permute.xlu0 %211
    %215 = vset.pattern.permute.xlu0 0
    %216 = vperm.xlu0 %215, %v161
    %v217 = vpop.permute.xlu0 %216
    %220 = vset.pattern.permute.xlu0 0
    %221 = vperm.xlu0 %220, %v162
    %v222 = vpop.permute.xlu0 %221
    %225 = vset.pattern.permute.xlu0 0
    %226 = vperm.xlu0 %225, %v163
    %v227 = vpop.permute.xlu0 %226
    %v229 = vld [vmem:[%s4] sm:$0xf]
    %231 = vset.pattern.permute.xlu0 0
    %232 = vperm.xlu0 %231, %v229
    %v233 = vpop.permute.xlu0 %232
    %v235 = vld [vmem:[%s3] sm:$0xf]
    %v236 = vld [vmem:[%s0] sm:$0x3]
    %v237 = vperm.slane %v236, 0
    %v238 = vmul.f32 %v37, %v237
    %v239 = vmul.f32 %v42, %v237
    %v240 = vmul.f32 %v47, %v237
    %v241 = vmul.f32 %v52, %v237
    %v242 = vmul.f32 %v57, %v237
    %v243 = vmul.f32 %v62, %v237
    %v244 = vmul.f32 %v67, %v237
    %v245 = vmul.f32 %v72, %v237
    %v246 = vmul.f32 %v77, %v237
    %v247 = vmul.f32 %v82, %v237
    %v248 = vmul.f32 %v87, %v237
    %v249 = vmul.f32 %v92, %v237
    %v250 = vmul.f32 %v97, %v237
    %v251 = vperm.slane %v236, 1
    %v252 = vmul.f32 %v101, %v251
    %v253 = vmul.f32 %v105, %v251
    %v254 = vmul.f32 %v109, %v251
    %v255 = vmul.f32 %v113, %v251
    %v256 = vmul.f32 %v117, %v251
    %v257 = vmul.f32 %v121, %v251
    %v258 = vmul.f32 %v125, %v251
    %v259 = vmul.f32 %v129, %v251
    %v260 = vmul.f32 %v133, %v251
    %v261 = vmul.f32 %v137, %v251
    %v262 = vmul.f32 %v141, %v251
    %v263 = vmul.f32 %v145, %v251
    %v264 = vmul.f32 %v149, %v251
    %v265 = vadd.f32 %v238, %v252
    %v266 = vadd.f32 %v239, %v253
    %v267 = vadd.f32 %v240, %v254
    %v268 = vadd.f32 %v241, %v255
    %v269 = vadd.f32 %v242, %v256
    %v270 = vadd.f32 %v243, %v257
    %v271 = vadd.f32 %v244, %v258
    %v272 = vadd.f32 %v245, %v259
    %v273 = vadd.f32 %v246, %v260
    %v274 = vadd.f32 %v247, %v261
    %v275 = vadd.f32 %v248, %v262
    %v276 = vadd.f32 %v249, %v263
    %v277 = vadd.f32 %v250, %v264
    %v278 = vadd.f32 %v265, %v167
    %v279 = vadd.f32 %v266, %v172
    %v280 = vadd.f32 %v267, %v177
    %v281 = vadd.f32 %v268, %v182
    %v282 = vadd.f32 %v269, %v187
    %v283 = vadd.f32 %v270, %v192
    %v284 = vadd.f32 %v271, %v197
    %v285 = vadd.f32 %v272, %v202
    %v286 = vadd.f32 %v273, %v207
    %v287 = vadd.f32 %v274, %v212
    %v288 = vadd.f32 %v275, %v217
    %v289 = vadd.f32 %v276, %v222
    %v290 = vadd.f32 %v277, %v227
    %v291 = vmax.f32 %v278, 0.0
    %v292 = vmax.f32 %v279, 0.0
    %v293 = vmax.f32 %v280, 0.0
    %v294 = vmax.f32 %v281, 0.0
    %v295 = vmax.f32 %v282, 0.0
    %v296 = vmax.f32 %v283, 0.0
    %v297 = vmax.f32 %v284, 0.0
    %v298 = vmax.f32 %v285, 0.0
    %v299 = vmax.f32 %v286, 0.0
    %v300 = vmax.f32 %v287, 0.0
    %v301 = vmax.f32 %v288, 0.0
    %v302 = vmax.f32 %v289, 0.0
    %v303 = vmax.f32 %v290, 0.0
    %vm304 = vcmask 818176
    %v306 = vsel %vm304, %v235, 0
    %vm308 = vcmask 1043456
    %v310 = vsel %vm308, %v303, 0
    %312 = vmatpush.msra.mxu0 0.0
    %313 = vmatpush.msra.mxu0 0.0
    %314 = vmatpush.msra.mxu0 0.0
    %315 = vmatpush.msra.mxu0 %v310
    %316 = vmatpush.msra.mxu0 %v302
    %317 = vmatpush.msra.mxu0 %v301
    %318 = vmatpush.msra.mxu0 %v300
    %319 = vmatpush.msra.mxu0 %v299
    %320 = vmatpush.msra.mxu0 %v298
    %321 = vmatpush.msra.mxu0 %v297
    %322 = vmatpush.msra.mxu0 %v296
    %323 = vmatpush.msra.mxu0 %v295
    %324 = vmatpush.msra.mxu0 %v294
    %325 = vmatpush.msra.mxu0 %v293
    %326 = vmatpush.msra.mxu0 %v292
    %327 = vmatpush.msra.mxu0 %v291
    %328 = vmatmul.f32.gmra.mxu0 %v306
    %v329 = vpop.f32.mrf.mxu0
    %v330 = vadd.f32 %v233, %v329
    %331 = vdwg.mxu0
    %332 = vst [vmem:[#allocation2] sm:$0xf] %v330
    // Predicated region
    $region22: #{tpu_custom_call.1} parent=1 // pred_check
      _
    $region23: #{tpu_custom_call.1} parent=1 // pred_check_branch
      %334 = sbr.rel (0) target = $region25
    $region24: #{tpu_custom_call.1} parent=1 // pred_region
      %336 = vsyncadd [#allocation3], 0
      %s338 = sshll.u32 [#allocation2], 4
      %s339 = int_to_ptr.vmem [resolvable:$true] %s338
      %s340 = sshll.u32 %s5, 4
      %s341 = int_to_ptr.hbm [resolvable:$true] %s340
      %343 = dma.vmem_to_hbm [thread:$0]  %s339, 64, %s341, [#allocation3]
    $region25: #{tpu_custom_call.1} parent=1 // pred_fallthru
      _
    // Predicated region
    $region26: #{tpu_custom_call.1} parent=1 // pred_check
      _
    $region27: #{tpu_custom_call.1} parent=1 // pred_check_branch
      %345 = sbr.rel (0) target = $region29
    $region28: #{tpu_custom_call.1} parent=1 // pred_region
      %347 = dma.done [#allocation3], 64
    $region29: #{tpu_custom_call.1} parent=1 // pred_fallthru
      _
    %348 = vsyncpa [#allocation3], 1

</llo_original>
